<compile_context>
chip_gen: v6e
topology: v6e:2x2x1
jax: 0.10.0
libtpu: 0.0.40
codegen_flags: <defaults>
</compile_context>

<pallas_src>
import jax
import jax.numpy as jnp
from jax.experimental import pallas as pl
from jax.experimental.pallas import tpu as pltpu


def ios_detect_kernel(w_ref, scale_ref, x_ref, pred_ref):
    # w: (no, C) bf16 resident; scale: (no, 1) f32 resident;
    # x: (C, TA) f32 streamed (cast to bf16 here -> no extra HBM pass);
    # pred: (no, TA) bf16, anchors on the 128-lane axis (lane-dense stores).
    acc = jnp.dot(w_ref[...], x_ref[...].astype(jnp.bfloat16),
                  preferred_element_type=jnp.float32)
    pred_ref[...] = (scale_ref[...] * acc).astype(pred_ref.dtype)


def _choose_anchor_tile(A, C, no, *, vmem_budget_bytes=20 << 20,
                        ta_cap=32768, ta_split_min=2048):
    """128-aligned anchor tile sized from a VMEM budget.

    Double-buffered per-lane footprint = 2 * (C*4 [f32 x-block] + no*2 [bf16 out]).
    Prefers large tiles (amortizes ~0.35us/step pipeline overhead) and an even
    step count >= 2 at large A so both v7x TensorCores get work.
    """
    a_pad = pl.cdiv(A, 128) * 128
    per_lane = 2 * (C * 4 + no * 2)
    ta = (vmem_budget_bytes // per_lane) // 128 * 128
    ta = max(128, min(ta, ta_cap))
    steps = pl.cdiv(a_pad, ta)
    if steps == 1 and a_pad >= 2 * ta_split_min:
        steps = 2                       # keep both TensorCores busy on v7x
    if steps > 1 and steps % 2:
        steps += 1                      # even step count for megacore balance
    return max(128, pl.cdiv(pl.cdiv(a_pad, steps), 128) * 128)


def ios_detect_forward(x, w_head, normalize, *, lane_dense_output=False,
                       vmem_budget_bytes=20 << 20, ta_cap=32768):
    """x: (B, C, H, W) f32; w_head: (4+nc, C); normalize: scalar or (4,).

    Returns (cls (A, nc), xywh (A, 4)) in bf16, matching IOSDetectModel.forward.
    With lane_dense_output=True, returns the untransposed (nc, A) / (4, A)
    views instead (cheapest layout if the consumer can take it).
    """
    B, C, H, W = x.shape
    A = H * W
    no = w_head.shape[0]
    nc = no - 4

    # Per-row scale: xywh rows get `normalize`, cls rows get 1.0. Applied to the
    # f32 accumulator inside the kernel — exact f32 scaling (no bf16 rounding of
    # the scale), same math as the module's post-conv multiply.
    norm4 = jnp.broadcast_to(jnp.asarray(normalize, jnp.float32).reshape(-1), (4,))
    scale = jnp.concatenate([norm4, jnp.ones((nc,), jnp.float32)]).reshape(no, 1)

    w_bf = jnp.asarray(w_head, jnp.float32).astype(jnp.bfloat16)        # (no, C)

    # Flatten batch element 0, NO cast and NO pad here (both done in/around the
    # kernel). The CoreML export path is batch-1; `self.model(x)[0]` coincides
    # with batch element 0.
    # TODO(synk): add a batch grid axis if a B>1 variant is ever required.
    xf = x[0].reshape(C, A)                                             # (C, A) f32

    ta = _choose_anchor_tile(A, C, no, vmem_budget_bytes=vmem_budget_bytes,
                             ta_cap=ta_cap)
    grid = (pl.cdiv(A, ta),)                                            # ragged last block OK

    pred = pl.pallas_call(
        ios_detect_kernel,
        out_shape=jax.ShapeDtypeStruct((no, A), jnp.bfloat16),
        grid=grid,
        in_specs=[pl.BlockSpec((no, C), lambda i: (0, 0)),   # weights resident
                  pl.BlockSpec((no, 1), lambda i: (0, 0)),   # normalize scale resident
                  pl.BlockSpec((C, ta), lambda i: (0, i))],  # stream f32 anchor tiles
        out_specs=pl.BlockSpec((no, ta), lambda i: (0, i)),  # lane-dense bf16 output
        compiler_params=pltpu.CompilerParams(
            dimension_semantics=("parallel",),
            vmem_limit_bytes=32 * 1024 * 1024),
        cost_estimate=pl.CostEstimate(
            flops=2 * no * C * A,
            transcendentals=0,
            bytes_accessed=C * A * 4 + no * A * 2 + no * C * 2 + no * 4),
    )(w_bf, scale, xf)

    if lane_dense_output:
        # Cheapest for downstream consumers: no transpose materialization.
        return pred[4:], pred[:4]                            # (nc, A), (4, A)

    # Module-faithful (A, nc)/(A, 4) layout. The transpose is wrapper plumbing
    # on the small bf16 slab (half the traffic it would be in f32).
    pred_t = pred.T                                          # (A, no)
    return pred_t[:, 4:], pred_t[:, :4]


if __name__ == "__main__":
    # Small, module-consistent shapes: batch=2, channels=16, spatial=16x16, nc=8 classes.
    B, C, H, W = 2, 16, 16, 16
    nc = 8
    no = nc + 4
    key = jax.random.PRNGKey(0)
    kx, kw = jax.random.split(key)
    x = jax.random.normal(kx, (B, C, H, W), dtype=jnp.float32)
    w_head = jax.random.normal(kw, (no, C), dtype=jnp.float32) * 0.1  # synthetic detection head

    normalize = 1.0 / W  # square input -> scalar, matching the PyTorch branch w == h

    fwd = jax.jit(lambda xx, ww, nn: ios_detect_forward(xx, ww, nn))
    cls, xywh = fwd(x, w_head, normalize)
    jax.block_until_ready((cls, xywh))

    A = H * W
    assert cls.shape == (A, nc) and xywh.shape == (A, 4)

    # Reference 1: identical numeric path (bf16 MXU dot, f32 accumulate + scale,
    # bf16 store) — validates the kernel itself to tight tolerance.
    xf = x[0].reshape(C, A)
    scale = jnp.concatenate([jnp.full((4,), normalize, jnp.float32),
                             jnp.ones((nc,), jnp.float32)]).reshape(no, 1)
    acc = jnp.dot(w_head.astype(jnp.bfloat16), xf.astype(jnp.bfloat16),
                  preferred_element_type=jnp.float32)
    pred1 = (scale * acc).astype(jnp.bfloat16)                        # (no, A)
    assert jnp.allclose(xywh.astype(jnp.float32), pred1[:4].T.astype(jnp.float32),
                        atol=1e-3, rtol=1e-3)
    assert jnp.allclose(cls.astype(jnp.float32), pred1[4:].T.astype(jnp.float32),
                        atol=1e-3, rtol=1e-3)

    # Reference 2: original full-f32 PyTorch semantics (loose tol for bf16 compute/store).
    pred_f32 = (w_head @ xf).T                                        # (A, no)
    assert jnp.allclose(xywh.astype(jnp.float32), pred_f32[:, :4] * normalize,
                        atol=2e-2, rtol=2e-2)
    assert jnp.allclose(cls.astype(jnp.float32), pred_f32[:, 4:],
                        atol=2e-2, rtol=2e-2)

    print("KERNEL_OK")
</pallas_src>

<mosaic_0001>
module attributes {stable_mosaic.version = 11 : i64} {
  func.func @ios_detect_kernel(%arg0: i32, %arg1: memref<12x16xbf16, #tpu.memory_space<vmem>>, %arg2: memref<12x1xf32, #tpu.memory_space<vmem>>, %arg3: memref<16x256xf32, #tpu.memory_space<vmem>>, %arg4: memref<12x256xbf16, #tpu.memory_space<vmem>>) attributes {dimension_semantics = [#tpu.dimension_semantics<parallel>], iteration_bounds = array<i64: 1>, scalar_prefetch = 0 : i64, scratch_operands = 0 : i64, tpu.core_type = #tpu.core_type<tc>, window_params = [{pipeline_mode = #tpu.pipeline_mode<synchronous>, transform_indices = @transform_0, window_bounds = array<i64: 12, 16>}, {pipeline_mode = #tpu.pipeline_mode<synchronous>, transform_indices = @transform_1, window_bounds = array<i64: 12, 1>}, {transform_indices = @transform_2, window_bounds = array<i64: 16, 256>}, {transform_indices = @transform_3, window_bounds = array<i64: 12, 256>}]} {
    %c0 = arith.constant 0 : index
    %c0_0 = arith.constant 0 : index
    %0 = vector.load %arg1[%c0, %c0_0] : memref<12x16xbf16, #tpu.memory_space<vmem>>, vector<12x16xbf16>
    %c0_1 = arith.constant 0 : index
    %c0_2 = arith.constant 0 : index
    %1 = vector.load %arg3[%c0_1, %c0_2] : memref<16x256xf32, #tpu.memory_space<vmem>>, vector<16x256xf32>
    %2 = arith.truncf %1 : vector<16x256xf32> to vector<16x256xbf16>
    %cst = arith.constant dense<0.000000e+00> : vector<12x256xf32>
    %3 = tpu.matmul %0, %2, %cst {dimension_numbers = #tpu.dot_dimension_numbers<[1], [0], [0], [1], [0, 0, 1, 1], [], []>} : vector<12x16xbf16>, vector<16x256xbf16>, vector<12x256xf32> -> vector<12x256xf32>
    %c0_3 = arith.constant 0 : index
    %c0_4 = arith.constant 0 : index
    %4 = vector.load %arg2[%c0_3, %c0_4] : memref<12x1xf32, #tpu.memory_space<vmem>>, vector<12x1xf32>
    %5 = vector.broadcast %4 : vector<12x1xf32> to vector<12x256xf32>
    %6 = arith.mulf %5, %3 : vector<12x256xf32>
    %7 = arith.truncf %6 : vector<12x256xf32> to vector<12x256xbf16>
    %c0_5 = arith.constant 0 : index
    %c0_6 = arith.constant 0 : index
    %8 = vector.load %arg4[%c0_5, %c0_6] : memref<12x256xbf16, #tpu.memory_space<vmem>>, vector<12x256xbf16>
    tpu.vector_store %arg4[%c0_5, %c0_6], %7 {strides = array<i32>} : memref<12x256xbf16, #tpu.memory_space<vmem>>, vector<12x256xbf16>,
    return
  }
  func.func @transform_0(%arg0: i32) -> (i32, i32) {
    %c0_i32 = arith.constant 0 : i32
    %c0_i32_0 = arith.constant 0 : i32
    %c0_i32_1 = arith.constant 0 : i32
    return %c0_i32, %c0_i32_0 : i32, i32
  }
  func.func @transform_1(%arg0: i32) -> (i32, i32) {
    %c0_i32 = arith.constant 0 : i32
    %c0_i32_0 = arith.constant 0 : i32
    %c0_i32_1 = arith.constant 0 : i32
    return %c0_i32, %c0_i32_0 : i32, i32
  }
  func.func @transform_2(%arg0: i32) -> (i32, i32) {
    %c0_i32 = arith.constant 0 : i32
    %c0_i32_0 = arith.constant 0 : i32
    return %c0_i32, %arg0 : i32, i32
  }
  func.func @transform_3(%arg0: i32) -> (i32, i32) {
    %c0_i32 = arith.constant 0 : i32
    %c0_i32_0 = arith.constant 0 : i32
    return %c0_i32, %arg0 : i32, i32
  }
}

</mosaic_0001>

<llo_original>
// kernel: squeeze.1
$region0: #{squeeze.1}
  %s0 = inlined_call_operand.vmem [shape: f32[1,16,16,16], index: 0, kind: input, shape index: {}]
  %s1 = inlined_call_operand.vmem [shape: f32[16,256], index: 1, kind: output, shape index: {}]
  %v2 = vld [vmem:[%s0] ss:$8 sm:$0xf]
  %v3 = vld [vmem:[%s0] ss:$8 sm:$0xf0]
  %vm4 = vcmask 1047556
  %v5 = vsel %vm4, %v3, %v2
  %vm6 = vcmask 130048
  %7 = vst.msk [vmem:[%s1] ss:$8 sm:$0x3] %vm6, %v5
  %s8 = scalar_lea.vmem %s1, 4294967281
  %9 = vst.msk [vmem:[%s8] ss:$8 sm:$0xc] %vm6, %v5
  %s10 = scalar_lea.vmem %s1, 4294967266
  %11 = vst.msk [vmem:[%s10] ss:$8 sm:$0x30] %vm6, %v5
  %s12 = scalar_lea.vmem %s1, 4294967251
  %13 = vst.msk [vmem:[%s12] ss:$8 sm:$0xc0] %vm6, %v5
  %s14 = scalar_lea.vmem %s0, 64
  %v15 = vld [vmem:[%s14] ss:$8 sm:$0xf]
  %s16 = scalar_lea.vmem %s0, 64
  %v17 = vld [vmem:[%s16] ss:$8 sm:$0xf0]
  %vm18 = vcmask 1047556
  %v19 = vsel %vm18, %v17, %v15
  %vm20 = vcmask 130048
  %s21 = scalar_lea.vmem %s1, 4
  %22 = vst.msk [vmem:[%s21] ss:$8 sm:$0x3] %vm20, %v19
  %s23 = scalar_lea.vmem %s1, 4294967285
  %24 = vst.msk [vmem:[%s23] ss:$8 sm:$0xc] %vm20, %v19
  %s25 = scalar_lea.vmem %s1, 4294967270
  %26 = vst.msk [vmem:[%s25] ss:$8 sm:$0x30] %vm20, %v19
  %s27 = scalar_lea.vmem %s1, 4294967255
  %28 = vst.msk [vmem:[%s27] ss:$8 sm:$0xc0] %vm20, %v19
  %s29 = scalar_lea.vmem %s0, 128
  %v30 = vld [vmem:[%s29] ss:$8 sm:$0xf]
  %s31 = scalar_lea.vmem %s0, 128
  %v32 = vld [vmem:[%s31] ss:$8 sm:$0xf0]
  %vm33 = vcmask 1047556
  %v34 = vsel %vm33, %v32, %v30
  %vm35 = vcmask 130048
  %s36 = scalar_lea.vmem %s1, 16
  %37 = vst.msk [vmem:[%s36] ss:$8 sm:$0x3] %vm35, %v34
  %s38 = scalar_lea.vmem %s1, 1
  %39 = vst.msk [vmem:[%s38] ss:$8 sm:$0xc] %vm35, %v34
  %s40 = scalar_lea.vmem %s1, 4294967282
  %41 = vst.msk [vmem:[%s40] ss:$8 sm:$0x30] %vm35, %v34
  %s42 = scalar_lea.vmem %s1, 4294967267
  %43 = vst.msk [vmem:[%s42] ss:$8 sm:$0xc0] %vm35, %v34
  %s44 = scalar_lea.vmem %s0, 192
  %v45 = vld [vmem:[%s44] ss:$8 sm:$0xf]
  %s46 = scalar_lea.vmem %s0, 192
  %v47 = vld [vmem:[%s46] ss:$8 sm:$0xf0]
  %vm48 = vcmask 1047556
  %v49 = vsel %vm48, %v47, %v45
  %vm50 = vcmask 130048
  %s51 = scalar_lea.vmem %s1, 20
  %52 = vst.msk [vmem:[%s51] ss:$8 sm:$0x3] %vm50, %v49
  %s53 = scalar_lea.vmem %s1, 5
  %54 = vst.msk [vmem:[%s53] ss:$8 sm:$0xc] %vm50, %v49
  %s55 = scalar_lea.vmem %s1, 4294967286
  %56 = vst.msk [vmem:[%s55] ss:$8 sm:$0x30] %vm50, %v49
  %s57 = scalar_lea.vmem %s1, 4294967271
  %58 = vst.msk [vmem:[%s57] ss:$8 sm:$0xc0] %vm50, %v49
  %s59 = scalar_lea.vmem %s0, 7
  %s60 = smov 3
  %v61 = vld [vmem:[%s59] ss:$16 sm:%s60]
  %s62 = scalar_lea.vmem %s0, 7
  %s63 = smov 12
  %v64 = vld [vmem:[%s62] ss:$16 sm:%s63]
  %vm65 = vcmask 1043458
  %v66 = vsel %vm65, %v64, %v61
  %s67 = scalar_lea.vmem %s0, 7
  %s68 = smov 48
  %v69 = vld [vmem:[%s67] ss:$16 sm:%s68]
  %vm70 = vcmask 1045508
  %v71 = vsel %vm70, %v69, %v66
  %s72 = scalar_lea.vmem %s0, 7
  %s73 = smov 192
  %v74 = vld [vmem:[%s72] ss:$16 sm:%s73]
  %vm75 = vcmask 1047558
  %v76 = vsel %vm75, %v74, %v71
  %77 = vrot.lane.b32.xlu0 %v76, 112
  %v78 = vpop.permute.xlu0 %77
  %vm79 = vcmask 1048448
  %80 = vst.msk [vmem:[%s1] sm:$0xff] %vm79, %v78
  %s81 = scalar_lea.vmem %s0, 15
  %s82 = smov 3
  %v83 = vld [vmem:[%s81] ss:$16 sm:%s82]
  %s84 = scalar_lea.vmem %s0, 15
  %s85 = smov 12
  %v86 = vld [vmem:[%s84] ss:$16 sm:%s85]
  %vm87 = vcmask 1043458
  %v88 = vsel %vm87, %v86, %v83
  %s89 = scalar_lea.vmem %s0, 15
  %s90 = smov 48
  %v91 = vld [vmem:[%s89] ss:$16 sm:%s90]
  %vm92 = vcmask 1045508
  %v93 = vsel %vm92, %v91, %v88
  %s94 = scalar_lea.vmem %s0, 15
  %s95 = smov 192
  %v96 = vld [vmem:[%s94] ss:$16 sm:%s95]
  %vm97 = vcmask 1047558
  %v98 = vsel %vm97, %v96, %v93
  %99 = vrot.lane.b32.xlu0 %v98, 112
  %v100 = vpop.permute.xlu0 %99
  %vm101 = vcmask 1048448
  %s102 = scalar_lea.vmem %s1, 8
  %103 = vst.msk [vmem:[%s102] sm:$0xff] %vm101, %v100
  %s104 = scalar_lea.vmem %s0, 135
  %s105 = smov 3
  %v106 = vld [vmem:[%s104] ss:$16 sm:%s105]
  %s107 = scalar_lea.vmem %s0, 135
  %s108 = smov 12
  %v109 = vld [vmem:[%s107] ss:$16 sm:%s108]
  %vm110 = vcmask 1043458
  %v111 = vsel %vm110, %v109, %v106
  %s112 = scalar_lea.vmem %s0, 135
  %s113 = smov 48
  %v114 = vld [vmem:[%s112] ss:$16 sm:%s113]
  %vm115 = vcmask 1045508
  %v116 = vsel %vm115, %v114, %v111
  %s117 = scalar_lea.vmem %s0, 135
  %s118 = smov 192
  %v119 = vld [vmem:[%s117] ss:$16 sm:%s118]
  %vm120 = vcmask 1047558
  %v121 = vsel %vm120, %v119, %v116
  %122 = vrot.lane.b32.xlu0 %v121, 112
  %v123 = vpop.permute.xlu0 %122
  %vm124 = vcmask 1048448
  %s125 = scalar_lea.vmem %s1, 16
  %126 = vst.msk [vmem:[%s125] sm:$0xff] %vm124, %v123
  %s127 = scalar_lea.vmem %s0, 143
  %s128 = smov 3
  %v129 = vld [vmem:[%s127] ss:$16 sm:%s128]
  %s130 = scalar_lea.vmem %s0, 143
  %s131 = smov 12
  %v132 = vld [vmem:[%s130] ss:$16 sm:%s131]
  %vm133 = vcmask 1043458
  %v134 = vsel %vm133, %v132, %v129
  %s135 = scalar_lea.vmem %s0, 143
  %s136 = smov 48
  %v137 = vld [vmem:[%s135] ss:$16 sm:%s136]
  %vm138 = vcmask 1045508
  %v139 = vsel %vm138, %v137, %v134
  %s140 = scalar_lea.vmem %s0, 143
  %s141 = smov 192
  %v142 = vld [vmem:[%s140] ss:$16 sm:%s141]
  %vm143 = vcmask 1047558
  %v144 = vsel %vm143, %v142, %v139
  %145 = vrot.lane.b32.xlu0 %v144, 112
  %v146 = vpop.permute.xlu0 %145
  %vm147 = vcmask 1048448
  %s148 = scalar_lea.vmem %s1, 24
  %149 = vst.msk [vmem:[%s148] sm:$0xff] %vm147, %v146
  %s150 = scalar_lea.vmem %s0, 6
  %s151 = smov 3
  %v152 = vld [vmem:[%s150] ss:$16 sm:%s151]
  %s153 = scalar_lea.vmem %s0, 6
  %s154 = smov 12
  %v155 = vld [vmem:[%s153] ss:$16 sm:%s154]
  %vm156 = vcmask 1043458
  %v157 = vsel %vm156, %v155, %v152
  %s158 = scalar_lea.vmem %s0, 6
  %s159 = smov 48
  %v160 = vld [vmem:[%s158] ss:$16 sm:%s159]
  %vm161 = vcmask 1045508
  %v162 = vsel %vm161, %v160, %v157
  %s163 = scalar_lea.vmem %s0, 6
  %s164 = smov 192
  %v165 = vld [vmem:[%s163] ss:$16 sm:%s164]
  %vm166 = vcmask 1047558
  %v167 = vsel %vm166, %v165, %v162
  %168 = vrot.lane.b32.xlu0 %v167, 96
  %v169 = vpop.permute.xlu0 %168
  %vm170 = vcmask 917248
  %171 = vst.msk [vmem:[%s1] sm:$0xff] %vm170, %v169
  %s172 = scalar_lea.vmem %s0, 14
  %s173 = smov 3
  %v174 = vld [vmem:[%s172] ss:$16 sm:%s173]
  %s175 = scalar_lea.vmem %s0, 14
  %s176 = smov 12
  %v177 = vld [vmem:[%s175] ss:$16 sm:%s176]
  %vm178 = vcmask 1043458
  %v179 = vsel %vm178, %v177, %v174
  %s180 = scalar_lea.vmem %s0, 14
  %s181 = smov 48
  %v182 = vld [vmem:[%s180] ss:$16 sm:%s181]
  %vm183 = vcmask 1045508
  %v184 = vsel %vm183, %v182, %v179
  %s185 = scalar_lea.vmem %s0, 14
  %s186 = smov 192
  %v187 = vld [vmem:[%s185] ss:$16 sm:%s186]
  %vm188 = vcmask 1047558
  %v189 = vsel %vm188, %v187, %v184
  %190 = vrot.lane.b32.xlu0 %v189, 96
  %v191 = vpop.permute.xlu0 %190
  %vm192 = vcmask 917248
  %s193 = scalar_lea.vmem %s1, 8
  %194 = vst.msk [vmem:[%s193] sm:$0xff] %vm192, %v191
  %s195 = scalar_lea.vmem %s0, 134
  %s196 = smov 3
  %v197 = vld [vmem:[%s195] ss:$16 sm:%s196]
  %s198 = scalar_lea.vmem %s0, 134
  %s199 = smov 12
  %v200 = vld [vmem:[%s198] ss:$16 sm:%s199]
  %vm201 = vcmask 1043458
  %v202 = vsel %vm201, %v200, %v197
  %s203 = scalar_lea.vmem %s0, 134
  %s204 = smov 48
  %v205 = vld [vmem:[%s203] ss:$16 sm:%s204]
  %vm206 = vcmask 1045508
  %v207 = vsel %vm206, %v205, %v202
  %s208 = scalar_lea.vmem %s0, 134
  %s209 = smov 192
  %v210 = vld [vmem:[%s208] ss:$16 sm:%s209]
  %vm211 = vcmask 1047558
  %v212 = vsel %vm211, %v210, %v207
  %213 = vrot.lane.b32.xlu0 %v212, 96
  %v214 = vpop.permute.xlu0 %213
  %vm215 = vcmask 917248
  %s216 = scalar_lea.vmem %s1, 16
  %217 = vst.msk [vmem:[%s216] sm:$0xff] %vm215, %v214
  %s218 = scalar_lea.vmem %s0, 142
  %s219 = smov 3
  %v220 = vld [vmem:[%s218] ss:$16 sm:%s219]
  %s221 = scalar_lea.vmem %s0, 142
  %s222 = smov 12
  %v223 = vld [vmem:[%s221] ss:$16 sm:%s222]
  %vm224 = vcmask 1043458
  %v225 = vsel %vm224, %v223, %v220
  %s226 = scalar_lea.vmem %s0, 142
  %s227 = smov 48
  %v228 = vld [vmem:[%s226] ss:$16 sm:%s227]
  %vm229 = vcmask 1045508
  %v230 = vsel %vm229, %v228, %v225
  %s231 = scalar_lea.vmem %s0, 142
  %s232 = smov 192
  %v233 = vld [vmem:[%s231] ss:$16 sm:%s232]
  %vm234 = vcmask 1047558
  %v235 = vsel %vm234, %v233, %v230
  %236 = vrot.lane.b32.xlu0 %v235, 96
  %v237 = vpop.permute.xlu0 %236
  %vm238 = vcmask 917248
  %s239 = scalar_lea.vmem %s1, 24
  %240 = vst.msk [vmem:[%s239] sm:$0xff] %vm238, %v237
  %s241 = scalar_lea.vmem %s0, 5
  %s242 = smov 3
  %v243 = vld [vmem:[%s241] ss:$16 sm:%s242]
  %s244 = scalar_lea.vmem %s0, 5
  %s245 = smov 12
  %v246 = vld [vmem:[%s244] ss:$16 sm:%s245]
  %vm247 = vcmask 1043458
  %v248 = vsel %vm247, %v246, %v243
  %s249 = scalar_lea.vmem %s0, 5
  %s250 = smov 48
  %v251 = vld [vmem:[%s249] ss:$16 sm:%s250]
  %vm252 = vcmask 1045508
  %v253 = vsel %vm252, %v251, %v248
  %s254 = scalar_lea.vmem %s0, 5
  %s255 = smov 192
  %v256 = vld [vmem:[%s254] ss:$16 sm:%s255]
  %vm257 = vcmask 1047558
  %v258 = vsel %vm257, %v256, %v253
  %259 = vrot.lane.b32.xlu0 %v258, 80
  %v260 = vpop.permute.xlu0 %259
  %vm261 = vcmask 786048
  %262 = vst.msk [vmem:[%s1] sm:$0xff] %vm261, %v260
  %s263 = scalar_lea.vmem %s0, 13
  %s264 = smov 3
  %v265 = vld [vmem:[%s263] ss:$16 sm:%s264]
  %s266 = scalar_lea.vmem %s0, 13
  %s267 = smov 12
  %v268 = vld [vmem:[%s266] ss:$16 sm:%s267]
  %vm269 = vcmask 1043458
  %v270 = vsel %vm269, %v268, %v265
  %s271 = scalar_lea.vmem %s0, 13
  %s272 = smov 48
  %v273 = vld [vmem:[%s271] ss:$16 sm:%s272]
  %vm274 = vcmask 1045508
  %v275 = vsel %vm274, %v273, %v270
  %s276 = scalar_lea.vmem %s0, 13
  %s277 = smov 192
  %v278 = vld [vmem:[%s276] ss:$16 sm:%s277]
  %vm279 = vcmask 1047558
  %v280 = vsel %vm279, %v278, %v275
  %281 = vrot.lane.b32.xlu0 %v280, 80
  %v282 = vpop.permute.xlu0 %281
  %vm283 = vcmask 786048
  %s284 = scalar_lea.vmem %s1, 8
  %285 = vst.msk [vmem:[%s284] sm:$0xff] %vm283, %v282
  %s286 = scalar_lea.vmem %s0, 133
  %s287 = smov 3
  %v288 = vld [vmem:[%s286] ss:$16 sm:%s287]
  %s289 = scalar_lea.vmem %s0, 133
  %s290 = smov 12
  %v291 = vld [vmem:[%s289] ss:$16 sm:%s290]
  %vm292 = vcmask 1043458
  %v293 = vsel %vm292, %v291, %v288
  %s294 = scalar_lea.vmem %s0, 133
  %s295 = smov 48
  %v296 = vld [vmem:[%s294] ss:$16 sm:%s295]
  %vm297 = vcmask 1045508
  %v298 = vsel %vm297, %v296, %v293
  %s299 = scalar_lea.vmem %s0, 133
  %s300 = smov 192
  %v301 = vld [vmem:[%s299] ss:$16 sm:%s300]
  %vm302 = vcmask 1047558
  %v303 = vsel %vm302, %v301, %v298
  %304 = vrot.lane.b32.xlu0 %v303, 80
  %v305 = vpop.permute.xlu0 %304
  %vm306 = vcmask 786048
  %s307 = scalar_lea.vmem %s1, 16
  %308 = vst.msk [vmem:[%s307] sm:$0xff] %vm306, %v305
  %s309 = scalar_lea.vmem %s0, 141
  %s310 = smov 3
  %v311 = vld [vmem:[%s309] ss:$16 sm:%s310]
  %s312 = scalar_lea.vmem %s0, 141
  %s313 = smov 12
  %v314 = vld [vmem:[%s312] ss:$16 sm:%s313]
  %vm315 = vcmask 1043458
  %v316 = vsel %vm315, %v314, %v311
  %s317 = scalar_lea.vmem %s0, 141
  %s318 = smov 48
  %v319 = vld [vmem:[%s317] ss:$16 sm:%s318]
  %vm320 = vcmask 1045508
  %v321 = vsel %vm320, %v319, %v316
  %s322 = scalar_lea.vmem %s0, 141
  %s323 = smov 192
  %v324 = vld [vmem:[%s322] ss:$16 sm:%s323]
  %vm325 = vcmask 1047558
  %v326 = vsel %vm325, %v324, %v321
  %327 = vrot.lane.b32.xlu0 %v326, 80
  %v328 = vpop.permute.xlu0 %327
  %vm329 = vcmask 786048
  %s330 = scalar_lea.vmem %s1, 24
  %331 = vst.msk [vmem:[%s330] sm:$0xff] %vm329, %v328
  %s332 = scalar_lea.vmem %s0, 4
  %s333 = smov 3
  %v334 = vld [vmem:[%s332] ss:$16 sm:%s333]
  %s335 = scalar_lea.vmem %s0, 4
  %s336 = smov 12
  %v337 = vld [vmem:[%s335] ss:$16 sm:%s336]
  %vm338 = vcmask 1043458
  %v339 = vsel %vm338, %v337, %v334
  %s340 = scalar_lea.vmem %s0, 4
  %s341 = smov 48
  %v342 = vld [vmem:[%s340] ss:$16 sm:%s341]
  %vm343 = vcmask 1045508
  %v344 = vsel %vm343, %v342, %v339
  %s345 = scalar_lea.vmem %s0, 4
  %s346 = smov 192
  %v347 = vld [vmem:[%s345] ss:$16 sm:%s346]
  %vm348 = vcmask 1047558
  %v349 = vsel %vm348, %v347, %v344
  %350 = vrot.lane.b32.xlu0 %v349, 64
  %v351 = vpop.permute.xlu0 %350
  %vm352 = vcmask 654848
  %353 = vst.msk [vmem:[%s1] sm:$0xff] %vm352, %v351
  %s354 = scalar_lea.vmem %s0, 12
  %s355 = smov 3
  %v356 = vld [vmem:[%s354] ss:$16 sm:%s355]
  %s357 = scalar_lea.vmem %s0, 12
  %s358 = smov 12
  %v359 = vld [vmem:[%s357] ss:$16 sm:%s358]
  %vm360 = vcmask 1043458
  %v361 = vsel %vm360, %v359, %v356
  %s362 = scalar_lea.vmem %s0, 12
  %s363 = smov 48
  %v364 = vld [vmem:[%s362] ss:$16 sm:%s363]
  %vm365 = vcmask 1045508
  %v366 = vsel %vm365, %v364, %v361
  %s367 = scalar_lea.vmem %s0, 12
  %s368 = smov 192
  %v369 = vld [vmem:[%s367] ss:$16 sm:%s368]
  %vm370 = vcmask 1047558
  %v371 = vsel %vm370, %v369, %v366
  %372 = vrot.lane.b32.xlu0 %v371, 64
  %v373 = vpop.permute.xlu0 %372
  %vm374 = vcmask 654848
  %s375 = scalar_lea.vmem %s1, 8
  %376 = vst.msk [vmem:[%s375] sm:$0xff] %vm374, %v373
  %s377 = scalar_lea.vmem %s0, 132
  %s378 = smov 3
  %v379 = vld [vmem:[%s377] ss:$16 sm:%s378]
  %s380 = scalar_lea.vmem %s0, 132
  %s381 = smov 12
  %v382 = vld [vmem:[%s380] ss:$16 sm:%s381]
  %vm383 = vcmask 1043458
  %v384 = vsel %vm383, %v382, %v379
  %s385 = scalar_lea.vmem %s0, 132
  %s386 = smov 48
  %v387 = vld [vmem:[%s385] ss:$16 sm:%s386]
  %vm388 = vcmask 1045508
  %v389 = vsel %vm388, %v387, %v384
  %s390 = scalar_lea.vmem %s0, 132
  %s391 = smov 192
  %v392 = vld [vmem:[%s390] ss:$16 sm:%s391]
  %vm393 = vcmask 1047558
  %v394 = vsel %vm393, %v392, %v389
  %395 = vrot.lane.b32.xlu0 %v394, 64
  %v396 = vpop.permute.xlu0 %395
  %vm397 = vcmask 654848
  %s398 = scalar_lea.vmem %s1, 16
  %399 = vst.msk [vmem:[%s398] sm:$0xff] %vm397, %v396
  %s400 = scalar_lea.vmem %s0, 140
  %s401 = smov 3
  %v402 = vld [vmem:[%s400] ss:$16 sm:%s401]
  %s403 = scalar_lea.vmem %s0, 140
  %s404 = smov 12
  %v405 = vld [vmem:[%s403] ss:$16 sm:%s404]
  %vm406 = vcmask 1043458
  %v407 = vsel %vm406, %v405, %v402
  %s408 = scalar_lea.vmem %s0, 140
  %s409 = smov 48
  %v410 = vld [vmem:[%s408] ss:$16 sm:%s409]
  %vm411 = vcmask 1045508
  %v412 = vsel %vm411, %v410, %v407
  %s413 = scalar_lea.vmem %s0, 140
  %s414 = smov 192
  %v415 = vld [vmem:[%s413] ss:$16 sm:%s414]
  %vm416 = vcmask 1047558
  %v417 = vsel %vm416, %v415, %v412
  %418 = vrot.lane.b32.xlu0 %v417, 64
  %v419 = vpop.permute.xlu0 %418
  %vm420 = vcmask 654848
  %s421 = scalar_lea.vmem %s1, 24
  %422 = vst.msk [vmem:[%s421] sm:$0xff] %vm420, %v419
  %s423 = scalar_lea.vmem %s0, 3
  %s424 = smov 3
  %v425 = vld [vmem:[%s423] ss:$16 sm:%s424]
  %s426 = scalar_lea.vmem %s0, 3
  %s427 = smov 12
  %v428 = vld [vmem:[%s426] ss:$16 sm:%s427]
  %vm429 = vcmask 1043458
  %v430 = vsel %vm429, %v428, %v425
  %s431 = scalar_lea.vmem %s0, 3
  %s432 = smov 48
  %v433 = vld [vmem:[%s431] ss:$16 sm:%s432]
  %vm434 = vcmask 1045508
  %v435 = vsel %vm434, %v433, %v430
  %s436 = scalar_lea.vmem %s0, 3
  %s437 = smov 192
  %v438 = vld [vmem:[%s436] ss:$16 sm:%s437]
  %vm439 = vcmask 1047558
  %v440 = vsel %vm439, %v438, %v435
  %441 = vrot.lane.b32.xlu0 %v440, 48
  %v442 = vpop.permute.xlu0 %441
  %vm443 = vcmask 523648
  %444 = vst.msk [vmem:[%s1] sm:$0xff] %vm443, %v442
  %s445 = scalar_lea.vmem %s0, 11
  %s446 = smov 3
  %v447 = vld [vmem:[%s445] ss:$16 sm:%s446]
  %s448 = scalar_lea.vmem %s0, 11
  %s449 = smov 12
  %v450 = vld [vmem:[%s448] ss:$16 sm:%s449]
  %vm451 = vcmask 1043458
  %v452 = vsel %vm451, %v450, %v447
  %s453 = scalar_lea.vmem %s0, 11
  %s454 = smov 48
  %v455 = vld [vmem:[%s453] ss:$16 sm:%s454]
  %vm456 = vcmask 1045508
  %v457 = vsel %vm456, %v455, %v452
  %s458 = scalar_lea.vmem %s0, 11
  %s459 = smov 192
  %v460 = vld [vmem:[%s458] ss:$16 sm:%s459]
  %vm461 = vcmask 1047558
  %v462 = vsel %vm461, %v460, %v457
  %463 = vrot.lane.b32.xlu0 %v462, 48
  %v464 = vpop.permute.xlu0 %463
  %vm465 = vcmask 523648
  %s466 = scalar_lea.vmem %s1, 8
  %467 = vst.msk [vmem:[%s466] sm:$0xff] %vm465, %v464
  %s468 = scalar_lea.vmem %s0, 131
  %s469 = smov 3
  %v470 = vld [vmem:[%s468] ss:$16 sm:%s469]
  %s471 = scalar_lea.vmem %s0, 131
  %s472 = smov 12
  %v473 = vld [vmem:[%s471] ss:$16 sm:%s472]
  %vm474 = vcmask 1043458
  %v475 = vsel %vm474, %v473, %v470
  %s476 = scalar_lea.vmem %s0, 131
  %s477 = smov 48
  %v478 = vld [vmem:[%s476] ss:$16 sm:%s477]
  %vm479 = vcmask 1045508
  %v480 = vsel %vm479, %v478, %v475
  %s481 = scalar_lea.vmem %s0, 131
  %s482 = smov 192
  %v483 = vld [vmem:[%s481] ss:$16 sm:%s482]
  %vm484 = vcmask 1047558
  %v485 = vsel %vm484, %v483, %v480
  %486 = vrot.lane.b32.xlu0 %v485, 48
  %v487 = vpop.permute.xlu0 %486
  %vm488 = vcmask 523648
  %s489 = scalar_lea.vmem %s1, 16
  %490 = vst.msk [vmem:[%s489] sm:$0xff] %vm488, %v487
  %s491 = scalar_lea.vmem %s0, 139
  %s492 = smov 3
  %v493 = vld [vmem:[%s491] ss:$16 sm:%s492]
  %s494 = scalar_lea.vmem %s0, 139
  %s495 = smov 12
  %v496 = vld [vmem:[%s494] ss:$16 sm:%s495]
  %vm497 = vcmask 1043458
  %v498 = vsel %vm497, %v496, %v493
  %s499 = scalar_lea.vmem %s0, 139
  %s500 = smov 48
  %v501 = vld [vmem:[%s499] ss:$16 sm:%s500]
  %vm502 = vcmask 1045508
  %v503 = vsel %vm502, %v501, %v498
  %s504 = scalar_lea.vmem %s0, 139
  %s505 = smov 192
  %v506 = vld [vmem:[%s504] ss:$16 sm:%s505]
  %vm507 = vcmask 1047558
  %v508 = vsel %vm507, %v506, %v503
  %509 = vrot.lane.b32.xlu0 %v508, 48
  %v510 = vpop.permute.xlu0 %509
  %vm511 = vcmask 523648
  %s512 = scalar_lea.vmem %s1, 24
  %513 = vst.msk [vmem:[%s512] sm:$0xff] %vm511, %v510
  %s514 = scalar_lea.vmem %s0, 2
  %s515 = smov 3
  %v516 = vld [vmem:[%s514] ss:$16 sm:%s515]
  %s517 = scalar_lea.vmem %s0, 2
  %s518 = smov 12
  %v519 = vld [vmem:[%s517] ss:$16 sm:%s518]
  %vm520 = vcmask 1043458
  %v521 = vsel %vm520, %v519, %v516
  %s522 = scalar_lea.vmem %s0, 2
  %s523 = smov 48
  %v524 = vld [vmem:[%s522] ss:$16 sm:%s523]
  %vm525 = vcmask 1045508
  %v526 = vsel %vm525, %v524, %v521
  %s527 = scalar_lea.vmem %s0, 2
  %s528 = smov 192
  %v529 = vld [vmem:[%s527] ss:$16 sm:%s528]
  %vm530 = vcmask 1047558
  %v531 = vsel %vm530, %v529, %v526
  %532 = vrot.lane.b32.xlu0 %v531, 32
  %v533 = vpop.permute.xlu0 %532
  %vm534 = vcmask 392448
  %535 = vst.msk [vmem:[%s1] sm:$0xff] %vm534, %v533
  %s536 = scalar_lea.vmem %s0, 10
  %s537 = smov 3
  %v538 = vld [vmem:[%s536] ss:$16 sm:%s537]
  %s539 = scalar_lea.vmem %s0, 10
  %s540 = smov 12
  %v541 = vld [vmem:[%s539] ss:$16 sm:%s540]
  %vm542 = vcmask 1043458
  %v543 = vsel %vm542, %v541, %v538
  %s544 = scalar_lea.vmem %s0, 10
  %s545 = smov 48
  %v546 = vld [vmem:[%s544] ss:$16 sm:%s545]
  %vm547 = vcmask 1045508
  %v548 = vsel %vm547, %v546, %v543
  %s549 = scalar_lea.vmem %s0, 10
  %s550 = smov 192
  %v551 = vld [vmem:[%s549] ss:$16 sm:%s550]
  %vm552 = vcmask 1047558
  %v553 = vsel %vm552, %v551, %v548
  %554 = vrot.lane.b32.xlu0 %v553, 32
  %v555 = vpop.permute.xlu0 %554
  %vm556 = vcmask 392448
  %s557 = scalar_lea.vmem %s1, 8
  %558 = vst.msk [vmem:[%s557] sm:$0xff] %vm556, %v555
  %s559 = scalar_lea.vmem %s0, 130
  %s560 = smov 3
  %v561 = vld [vmem:[%s559] ss:$16 sm:%s560]
  %s562 = scalar_lea.vmem %s0, 130
  %s563 = smov 12
  %v564 = vld [vmem:[%s562] ss:$16 sm:%s563]
  %vm565 = vcmask 1043458
  %v566 = vsel %vm565, %v564, %v561
  %s567 = scalar_lea.vmem %s0, 130
  %s568 = smov 48
  %v569 = vld [vmem:[%s567] ss:$16 sm:%s568]
  %vm570 = vcmask 1045508
  %v571 = vsel %vm570, %v569, %v566
  %s572 = scalar_lea.vmem %s0, 130
  %s573 = smov 192
  %v574 = vld [vmem:[%s572] ss:$16 sm:%s573]
  %vm575 = vcmask 1047558
  %v576 = vsel %vm575, %v574, %v571
  %577 = vrot.lane.b32.xlu0 %v576, 32
  %v578 = vpop.permute.xlu0 %577
  %vm579 = vcmask 392448
  %s580 = scalar_lea.vmem %s1, 16
  %581 = vst.msk [vmem:[%s580] sm:$0xff] %vm579, %v578
  %s582 = scalar_lea.vmem %s0, 138
  %s583 = smov 3
  %v584 = vld [vmem:[%s582] ss:$16 sm:%s583]
  %s585 = scalar_lea.vmem %s0, 138
  %s586 = smov 12
  %v587 = vld [vmem:[%s585] ss:$16 sm:%s586]
  %vm588 = vcmask 1043458
  %v589 = vsel %vm588, %v587, %v584
  %s590 = scalar_lea.vmem %s0, 138
  %s591 = smov 48
  %v592 = vld [vmem:[%s590] ss:$16 sm:%s591]
  %vm593 = vcmask 1045508
  %v594 = vsel %vm593, %v592, %v589
  %s595 = scalar_lea.vmem %s0, 138
  %s596 = smov 192
  %v597 = vld [vmem:[%s595] ss:$16 sm:%s596]
  %vm598 = vcmask 1047558
  %v599 = vsel %vm598, %v597, %v594
  %600 = vrot.lane.b32.xlu0 %v599, 32
  %v601 = vpop.permute.xlu0 %600
  %vm602 = vcmask 392448
  %s603 = scalar_lea.vmem %s1, 24
  %604 = vst.msk [vmem:[%s603] sm:$0xff] %vm602, %v601
  %s605 = scalar_lea.vmem %s0, 1
  %s606 = smov 3
  %v607 = vld [vmem:[%s605] ss:$16 sm:%s606]
  %s608 = scalar_lea.vmem %s0, 1
  %s609 = smov 12
  %v610 = vld [vmem:[%s608] ss:$16 sm:%s609]
  %vm611 = vcmask 1043458
  %v612 = vsel %vm611, %v610, %v607
  %s613 = scalar_lea.vmem %s0, 1
  %s614 = smov 48
  %v615 = vld [vmem:[%s613] ss:$16 sm:%s614]
  %vm616 = vcmask 1045508
  %v617 = vsel %vm616, %v615, %v612
  %s618 = scalar_lea.vmem %s0, 1
  %s619 = smov 192
  %v620 = vld [vmem:[%s618] ss:$16 sm:%s619]
  %vm621 = vcmask 1047558
  %v622 = vsel %vm621, %v620, %v617
  %623 = vrot.lane.b32.xlu0 %v622, 16
  %v624 = vpop.permute.xlu0 %623
  %vm625 = vcmask 261248
  %626 = vst.msk [vmem:[%s1] sm:$0xff] %vm625, %v624
  %s627 = scalar_lea.vmem %s0, 9
  %s628 = smov 3
  %v629 = vld [vmem:[%s627] ss:$16 sm:%s628]
  %s630 = scalar_lea.vmem %s0, 9
  %s631 = smov 12
  %v632 = vld [vmem:[%s630] ss:$16 sm:%s631]
  %vm633 = vcmask 1043458
  %v634 = vsel %vm633, %v632, %v629
  %s635 = scalar_lea.vmem %s0, 9
  %s636 = smov 48
  %v637 = vld [vmem:[%s635] ss:$16 sm:%s636]
  %vm638 = vcmask 1045508
  %v639 = vsel %vm638, %v637, %v634
  %s640 = scalar_lea.vmem %s0, 9
  %s641 = smov 192
  %v642 = vld [vmem:[%s640] ss:$16 sm:%s641]
  %vm643 = vcmask 1047558
  %v644 = vsel %vm643, %v642, %v639
  %645 = vrot.lane.b32.xlu0 %v644, 16
  %v646 = vpop.permute.xlu0 %645
  %vm647 = vcmask 261248
  %s648 = scalar_lea.vmem %s1, 8
  %649 = vst.msk [vmem:[%s648] sm:$0xff] %vm647, %v646
  %s650 = scalar_lea.vmem %s0, 129
  %s651 = smov 3
  %v652 = vld [vmem:[%s650] ss:$16 sm:%s651]
  %s653 = scalar_lea.vmem %s0, 129
  %s654 = smov 12
  %v655 = vld [vmem:[%s653] ss:$16 sm:%s654]
  %vm656 = vcmask 1043458
  %v657 = vsel %vm656, %v655, %v652
  %s658 = scalar_lea.vmem %s0, 129
  %s659 = smov 48
  %v660 = vld [vmem:[%s658] ss:$16 sm:%s659]
  %vm661 = vcmask 1045508
  %v662 = vsel %vm661, %v660, %v657
  %s663 = scalar_lea.vmem %s0, 129
  %s664 = smov 192
  %v665 = vld [vmem:[%s663] ss:$16 sm:%s664]
  %vm666 = vcmask 1047558
  %v667 = vsel %vm666, %v665, %v662
  %668 = vrot.lane.b32.xlu0 %v667, 16
  %v669 = vpop.permute.xlu0 %668
  %vm670 = vcmask 261248
  %s671 = scalar_lea.vmem %s1, 16
  %672 = vst.msk [vmem:[%s671] sm:$0xff] %vm670, %v669
  %s673 = scalar_lea.vmem %s0, 137
  %s674 = smov 3
  %v675 = vld [vmem:[%s673] ss:$16 sm:%s674]
  %s676 = scalar_lea.vmem %s0, 137
  %s677 = smov 12
  %v678 = vld [vmem:[%s676] ss:$16 sm:%s677]
  %vm679 = vcmask 1043458
  %v680 = vsel %vm679, %v678, %v675
  %s681 = scalar_lea.vmem %s0, 137
  %s682 = smov 48
  %v683 = vld [vmem:[%s681] ss:$16 sm:%s682]
  %vm684 = vcmask 1045508
  %v685 = vsel %vm684, %v683, %v680
  %s686 = scalar_lea.vmem %s0, 137
  %s687 = smov 192
  %v688 = vld [vmem:[%s686] ss:$16 sm:%s687]
  %vm689 = vcmask 1047558
  %v690 = vsel %vm689, %v688, %v685
  %691 = vrot.lane.b32.xlu0 %v690, 16
  %v692 = vpop.permute.xlu0 %691
  %vm693 = vcmask 261248
  %s694 = scalar_lea.vmem %s1, 24
  %695 = vst.msk [vmem:[%s694] sm:$0xff] %vm693, %v692

// kernel: _lambda_.1
$region0: #{_lambda_.1}
  #allocation0 [shape = 'u32[]', space=smem, size = 0x4, offset = 0x4, fixed_abs, tag = 'smem constant byte address 0x4 - core index']
  #allocation1 [shape = 'u32[144,128]{1,0:T(1,128)}', space=vmem, size = 0x12000, scoped, tag = 'internal scratch']
  %s0 = inlined_call_operand.vmem [shape: bf16[12,16], index: 0, kind: input, shape index: {}]
  %s1 = inlined_call_operand.vmem [shape: f32[12,1], index: 1, kind: input, shape index: {}]
  %s2 = inlined_call_operand.vmem [shape: f32[16,256], index: 2, kind: input, shape index: {}]
  %s3 = inlined_call_operand.vmem [shape: bf16[12,256], index: 3, kind: output, shape index: {}]
  %s4 = sld [smem:[#allocation0]]
  $region22: #{_lambda_.1} parent=0
    _
  %s6 = ssub.s32 1, %s4
  %s7 = scalar_select 0, %s6, %s4
  // Predicated region
  $region2: #{_lambda_.1} parent=0 // pred_check
    _
  $region3: #{_lambda_.1} parent=0 // pred_check_branch
    %9 = sbr.rel (0) target = $region5
  $region4: #{_lambda_.1} parent=0 // pred_region
    _
  $region5: #{_lambda_.1} parent=0 // pred_fallthru
    _
  // Predicated region
  $region6: #{_lambda_.1} parent=0 // pred_check
    _
  $region7: #{_lambda_.1} parent=0 // pred_check_branch
    %11 = sbr.rel (0) target = $region9
  $region8: #{_lambda_.1} parent=0 // pred_region
    _
  $region9: #{_lambda_.1} parent=0 // pred_fallthru
    _
  // Predicated region
  $region10: #{_lambda_.1} parent=0 // pred_check
    _
  $region11: #{_lambda_.1} parent=0 // pred_check_branch
    %13 = sbr.rel (0) target = $region13
  $region12: #{_lambda_.1} parent=0 // pred_region
    _
  $region13: #{_lambda_.1} parent=0 // pred_fallthru
    _
  %v15 = vld [vmem:[%s0] sm:$0xf]
  %v16 = vld [vmem:[%s0 + $0x4] sm:$0x3]
  %v17 = vld [vmem:[%s2] sm:$0xff]
  %v18 = vld [vmem:[%s2 + $0x8] sm:$0xff]
  %v19 = vld [vmem:[%s2 + $0x10] sm:$0xff]
  %v20 = vld [vmem:[%s2 + $0x18] sm:$0xff]
  %v21 = vpack.c.bf16 %v19, %v17
  %v22 = vpack.c.bf16 %v20, %v18
  %v25 = vunpack.c.l.b16 %v15
  %v26 = vunpack.c.l.b16 %v16
  %v27 = vpack.c.b16 %v26, %v25
  %vm28 = vcmask 130048
  %v30 = vsel %vm28, %v27, 0
  %32 = vmatprep.subr.bf16.mxu0 0
  %33 = vmatpush1.bf16.msra.mxu0 0
  %34 = vmatprep.subr.bf16.mxu0 0
  %35 = vmatpush1.bf16.msra.mxu0 0
  %36 = vmatprep.subr.bf16.mxu0 0
  %37 = vmatpush1.bf16.msra.mxu0 0
  %38 = vmatprep.subr.bf16.mxu0 0
  %39 = vmatpush1.bf16.msra.mxu0 0
  %40 = vmatprep.subr.bf16.mxu0 0
  %41 = vmatpush1.bf16.msra.mxu0 0
  %42 = vmatprep.subr.bf16.mxu0 0
  %43 = vmatpush1.bf16.msra.mxu0 0
  %44 = vmatprep.subr.bf16.mxu0 0
  %45 = vmatpush1.bf16.msra.mxu0 0
  %46 = vmatprep.subr.bf16.mxu0 %v22
  %47 = vmatpush1.bf16.msra.mxu0 %v21
  %48 = vmatprep.subr.bf16.mxu0 0
  %49 = vmatpush2.bf16.msra.mxu0 0
  %50 = vmatprep.subr.bf16.mxu0 0
  %51 = vmatpush2.bf16.msra.mxu0 0
  %52 = vmatprep.subr.bf16.mxu0 0
  %53 = vmatpush2.bf16.msra.mxu0 0
  %54 = vmatprep.subr.bf16.mxu0 0
  %55 = vmatpush2.bf16.msra.mxu0 0
  %56 = vmatprep.subr.bf16.mxu0 0
  %57 = vmatpush2.bf16.msra.mxu0 0
  %58 = vmatprep.subr.bf16.mxu0 0
  %59 = vmatpush2.bf16.msra.mxu0 0
  %60 = vmatprep.subr.bf16.mxu0 0
  %61 = vmatpush2.bf16.msra.mxu0 0
  %62 = vmatprep.subr.bf16.mxu0 0
  %63 = vmatpush2.bf16.msra.mxu0 0
  %64 = vmatprep.mubr.bf16.mxu0 0
  %65 = vmatmul.mubr.bf16.gmra.mxu0 %v30
  %v66 = vpop.f32.mrf.mxu0
  %v67 = vadd.f32 0.0, %v66
  %v68 = vpop.f32.mrf.mxu0
  %v69 = vadd.f32 0.0, %v68
  %v70 = vpop.f32.mrf.mxu0
  %v71 = vadd.f32 0.0, %v70
  %v72 = vpop.f32.mrf.mxu0
  %v73 = vadd.f32 0.0, %v72
  %74 = vdwg.mxu0
  %v75 = vld [vmem:[%s1] sm:$0xff]
  %v76 = vld [vmem:[%s1 + $0x8] sm:$0xf]
  %78 = vset.pattern.permute.xlu0 0
  %79 = vperm.xlu0 %78, %v75
  %v80 = vpop.permute.xlu0 %79
  %83 = vset.pattern.permute.xlu0 0
  %84 = vperm.xlu0 %83, %v76
  %v85 = vpop.permute.xlu0 %84
  %v87 = vmul.f32 %v80, %v67
  %v88 = vmul.f32 %v80, %v69
  %v89 = vmul.f32 %v85, %v71
  %v90 = vmul.f32 %v85, %v73
  %v91 = vpack.c.bf16 %v89, %v87
  %v92 = vpack.c.bf16 %v90, %v88
  %v95 = vunpack.c.l.b16 %v91
  %v96 = vunpack.c.l.b16 %v92
  %v97 = vunpack.c.h.b16 %v91
  %v98 = vunpack.c.h.b16 %v92
  %v99 = vpack.c.b16 %v96, %v95
  %v100 = vpack.c.b16 %v98, %v97
  %103 = vst [vmem:[%s3] sm:$0xff] %v99
  %104 = vst [vmem:[%s3 + $0x8] sm:$0x33] %v100
  // Predicated region
  $region14: #{_lambda_.1} parent=0 // pred_check
    _
  $region15: #{_lambda_.1} parent=0 // pred_check_branch
    %106 = sbr.rel (0) target = $region17
  $region16: #{_lambda_.1} parent=0 // pred_region
    _
  $region17: #{_lambda_.1} parent=0 // pred_fallthru
    _
  // Predicated region
  $region18: #{_lambda_.1} parent=0 // pred_check
    _
  $region19: #{_lambda_.1} parent=0 // pred_check_branch
    %108 = sbr.rel (0) target = $region21
  $region20: #{_lambda_.1} parent=0 // pred_region
    _
  $region21: #{_lambda_.1} parent=0 // pred_fallthru
    _

</llo_original>
